<compile_context>
chip_gen: v7x
topology: tpu7x:2x2x1
jax: 0.10.0
libtpu: 0.0.40
codegen_flags: <defaults>
</compile_context>

<pallas_src>
import math

import jax
import jax.numpy as jnp
from jax import lax
from jax.experimental import pallas as pl
from jax.experimental.pallas import tpu as pltpu


# ---------------------------------------------------------------------------
# Glue: ceil-mode max pool (non-overlapping windows, stride == kernel)
# ---------------------------------------------------------------------------
def _maxpool_ceil(x, kh, kw):
    """MaxPool2d(kernel=(kh,kw), stride=(kh,kw), padding=0, ceil_mode=True)."""
    n, c, h, w = x.shape
    hp = -(-h // kh)
    wp = -(-w // kw)
    pad_h = hp * kh - h
    pad_w = wp * kw - w
    if pad_h or pad_w:
        x = jnp.pad(
            x,
            ((0, 0), (0, 0), (0, pad_h), (0, pad_w)),
            constant_values=-jnp.inf,
        )
    x = x.reshape(n, c, hp, kh, wp, kw)
    return jnp.max(x, axis=(3, 5))


# ---------------------------------------------------------------------------
# Pallas kernel: gram-then-scale normalized similarity + squared-diff reduce
# ---------------------------------------------------------------------------
def _make_pairwise_kernel(norm_const, eps=1e-8):
    """norm_const = 1 / (M^2 * N) baked in as a Python float."""

    def kernel(fs_ref, ft_ref, out_ref):
        fs = fs_ref[...]          # (B_tile, C, M), input dtype (f32 or bf16)
        ft = ft_ref[...]          # (B_tile, C, M)

        def norm_gram(f):
            # Raw gram over spatial positions: contract channel axis (dim 1)
            # of both operands, batch over dim 0.  MXU, f32 accumulation,
            # no explicit transpose.
            g = lax.dot_general(
                f, f,
                dimension_numbers=(((1,), (1,)), ((0,), (0,))),
                preferred_element_type=jnp.float32,
            )                                                   # (B, M, M)
            # Diagonal of g == per-position squared channel norm (free).
            mm = g.shape[-1]
            row = lax.broadcasted_iota(jnp.int32, (mm, mm), 0)
            col = lax.broadcasted_iota(jnp.int32, (mm, mm), 1)
            eye = (row == col).astype(jnp.float32)
            d = jnp.sum(g * eye[None, :, :], axis=-1)           # (B, M)
            inv = 1.0 / (jnp.sqrt(d) + jnp.float32(eps))        # (B, M)
            # G_norm[b,m,n] = G[b,m,n] * inv[b,m] * inv[b,n]
            return g * (inv[:, :, None] * inv[:, None, :])

        diff = norm_gram(ft) - norm_gram(fs)
        # One small reduction per grid step (step already covers B_tile
        # batch elements), written to this step's private SMEM partial.
        out_ref[0, 0] = jnp.sum(diff * diff) * jnp.float32(norm_const)

    return kernel


def criterion_pairwise_for_whole_feat_after_pool(preds_S, preds_T, scale):
    """Forward pass of CriterionPairWiseforWholeFeatAfterPool."""
    n, c, h, w = preds_T.shape
    patch_w = int(h * scale)   # pool kernel along dim 2 (torch naming)
    patch_h = int(w * scale)   # pool kernel along dim 3

    # Pool & DMA in the input dtype (no f32 upcast in the wrapper: bf16
    # activations keep half the HBM traffic).  The kernel accumulates in f32.
    feat_S = _maxpool_ceil(preds_S, patch_w, patch_h)
    feat_T = _maxpool_ceil(preds_T, patch_w, patch_h)

    hp, wp = feat_T.shape[2], feat_T.shape[3]
    m = hp * wp

    fs = feat_S.reshape(n, c, m)
    ft = feat_T.reshape(n, c, m)

    # --- batch tile: amortize per-step grid overhead, stay inside VMEM -----
    itemsize = fs.dtype.itemsize
    # per-batch-element VMEM cost: 2 inputs x 2 (double buffer) x C*M
    # plus ~3 (M,M) f32 temporaries (two grams + diff).
    per_elem = 4 * c * m * itemsize + 3 * m * m * 4
    budget = 8 * 1024 * 1024            # conservative for v7x's 64 MiB VMEM
    b_tile = max(1, min(n, 8, budget // max(per_elem, 1)))

    grid = -(-n // b_tile)
    n_pad = grid * b_tile
    if n_pad != n:
        # Zero-padded batch elements give an all-zero gram (0 * inv^2 == 0)
        # and therefore contribute exactly 0 to the loss.
        fs = jnp.pad(fs, ((0, n_pad - n), (0, 0), (0, 0)))
        ft = jnp.pad(ft, ((0, n_pad - n), (0, 0), (0, 0)))

    norm_const = 1.0 / (float(m) * float(m) * float(n))
    kernel = _make_pairwise_kernel(norm_const)

    partials = pl.pallas_call(
        kernel,
        out_shape=jax.ShapeDtypeStruct((grid, 1), jnp.float32),
        grid_spec=pltpu.PrefetchScalarGridSpec(
            num_scalar_prefetch=0,
            grid=(grid,),
            in_specs=[
                pl.BlockSpec((b_tile, c, m), lambda i: (i, 0, 0)),
                pl.BlockSpec((b_tile, c, m), lambda i: (i, 0, 0)),
            ],
            out_specs=pl.BlockSpec(
                (1, 1), lambda i: (i, 0), memory_space=pltpu.SMEM
            ),
        ),
        compiler_params=pltpu.CompilerParams(
            # Disjoint per-step partial outputs -> no accumulator race, so the
            # batch axis can be parallel (megacore sharding on v7x).
            dimension_semantics=("parallel",),
            vmem_limit_bytes=32 * 1024 * 1024,
        ),
    )(fs, ft)
    return jnp.sum(partials)


# ---------------------------------------------------------------------------
# Pure-JAX reference (mirrors the PyTorch code) for a sanity check
# ---------------------------------------------------------------------------
def _reference(preds_S, preds_T, scale):
    n, c, h, w = preds_T.shape
    kh, kw = int(h * scale), int(w * scale)
    fS = _maxpool_ceil(preds_S.astype(jnp.float32), kh, kw)
    fT = _maxpool_ceil(preds_T.astype(jnp.float32), kh, kw)

    def similarity(feat):
        norm = jnp.sqrt((feat ** 2).sum(axis=1, keepdims=True)) + 1e-8
        feat = feat / norm
        feat = feat.reshape(feat.shape[0], feat.shape[1], -1)
        return jnp.einsum("icm,icn->imn", feat, feat)

    m = fT.shape[-1] * fT.shape[-2]
    sim_err = (similarity(fT) - similarity(fS)) ** 2 / (m ** 2) / fT.shape[0]
    return sim_err.sum()


if __name__ == "__main__":
    key = jax.random.PRNGKey(0)
    k1, k2 = jax.random.split(key)

    N, C, H, W = 2, 4, 16, 16
    scale = 0.5  # -> pool kernel 8x8, pooled map 2x2, M = 4

    preds_S = jax.random.normal(k1, (N, C, H, W), dtype=jnp.float32)
    preds_T = jax.random.normal(k2, (N, C, H, W), dtype=jnp.float32)

    loss = criterion_pairwise_for_whole_feat_after_pool(preds_S, preds_T, scale)
    loss = jax.block_until_ready(loss)

    ref = jax.block_until_ready(_reference(preds_S, preds_T, scale))
    assert math.isfinite(float(loss))
    assert abs(float(loss) - float(ref)) <= 5e-5 * max(1.0, abs(float(ref))), (
        float(loss),
        float(ref),
    )

    print("KERNEL_OK")
</pallas_src>

<mosaic_0001>
module attributes {stable_mosaic.version = 11 : i64} {
  func.func @kernel(%arg0: i32, %arg1: memref<2x4x4xf32, #tpu.memory_space<vmem>>, %arg2: memref<2x4x4xf32, #tpu.memory_space<vmem>>, %arg3: memref<1x1xf32, #tpu.memory_space<smem>>) attributes {dimension_semantics = [#tpu.dimension_semantics<parallel>], iteration_bounds = array<i64: 1>, scalar_prefetch = 0 : i64, scratch_operands = 0 : i64, tpu.core_type = #tpu.core_type<tc>, window_params = [{transform_indices = @transform_0, window_bounds = array<i64: 2, 4, 4>}, {transform_indices = @transform_1, window_bounds = array<i64: 2, 4, 4>}, {transform_indices = @transform_2, window_bounds = array<i64: 1, 1>}]} {
    %c0 = arith.constant 0 : index
    %c0_0 = arith.constant 0 : index
    %c0_1 = arith.constant 0 : index
    %0 = vector.load %arg1[%c0, %c0_0, %c0_1] : memref<2x4x4xf32, #tpu.memory_space<vmem>>, vector<2x4x4xf32>
    %c0_2 = arith.constant 0 : index
    %c0_3 = arith.constant 0 : index
    %c0_4 = arith.constant 0 : index
    %1 = vector.load %arg2[%c0_2, %c0_3, %c0_4] : memref<2x4x4xf32, #tpu.memory_space<vmem>>, vector<2x4x4xf32>
    %cst = arith.constant dense<0.000000e+00> : vector<2x4x4xf32>
    %2 = tpu.matmul %1, %1, %cst {dimension_numbers = #tpu.dot_dimension_numbers<[1], [1], [2], [2], [0, 0, 0, 2, 1, 2], [0], [0]>} : vector<2x4x4xf32>, vector<2x4x4xf32>, vector<2x4x4xf32> -> vector<2x4x4xf32>
    %3 = tpu.iota {dimensions = array<i32: 0>} : vector<4x4xi32>
    %4 = tpu.iota {dimensions = array<i32: 1>} : vector<4x4xi32>
    %5 = arith.cmpi eq, %3, %4 : vector<4x4xi32>
    %6 = arith.extui %5 : vector<4x4xi1> to vector<4x4xi32>
    %7 = arith.sitofp %6 : vector<4x4xi32> to vector<4x4xf32>
    %8 = vector.shape_cast %7 : vector<4x4xf32> to vector<1x4x4xf32>
    %9 = vector.broadcast %8 : vector<1x4x4xf32> to vector<2x4x4xf32>
    %10 = arith.mulf %2, %9 : vector<2x4x4xf32>
    %cst_5 = arith.constant dense<0.000000e+00> : vector<2x4xf32>
    %11 = vector.multi_reduction <add>, %10, %cst_5 [2] : vector<2x4x4xf32> to vector<2x4xf32>
    %12 = math.sqrt %11 : vector<2x4xf32>
    %cst_6 = arith.constant 9.99999993E-9 : f32
    %13 = vector.broadcast %cst_6 : f32 to vector<2x4xf32>
    %14 = arith.addf %12, %13 : vector<2x4xf32>
    %cst_7 = arith.constant 1.000000e+00 : f32
    %15 = vector.broadcast %cst_7 : f32 to vector<2x4xf32>
    %16 = arith.divf %15, %14 : vector<2x4xf32>
    %17 = vector.shape_cast %16 : vector<2x4xf32> to vector<2x4x1xf32>
    %18 = vector.shape_cast %16 : vector<2x4xf32> to vector<2x1x4xf32>
    %19 = vector.broadcast %17 : vector<2x4x1xf32> to vector<2x4x4xf32>
    %20 = vector.broadcast %18 : vector<2x1x4xf32> to vector<2x4x4xf32>
    %21 = arith.mulf %19, %20 : vector<2x4x4xf32>
    %22 = arith.mulf %2, %21 : vector<2x4x4xf32>
    %cst_8 = arith.constant dense<0.000000e+00> : vector<2x4x4xf32>
    %23 = tpu.matmul %0, %0, %cst_8 {dimension_numbers = #tpu.dot_dimension_numbers<[1], [1], [2], [2], [0, 0, 0, 2, 1, 2], [0], [0]>} : vector<2x4x4xf32>, vector<2x4x4xf32>, vector<2x4x4xf32> -> vector<2x4x4xf32>
    %24 = tpu.iota {dimensions = array<i32: 0>} : vector<4x4xi32>
    %25 = tpu.iota {dimensions = array<i32: 1>} : vector<4x4xi32>
    %26 = arith.cmpi eq, %24, %25 : vector<4x4xi32>
    %27 = arith.extui %26 : vector<4x4xi1> to vector<4x4xi32>
    %28 = arith.sitofp %27 : vector<4x4xi32> to vector<4x4xf32>
    %29 = vector.shape_cast %28 : vector<4x4xf32> to vector<1x4x4xf32>
    %30 = vector.broadcast %29 : vector<1x4x4xf32> to vector<2x4x4xf32>
    %31 = arith.mulf %23, %30 : vector<2x4x4xf32>
    %cst_9 = arith.constant dense<0.000000e+00> : vector<2x4xf32>
    %32 = vector.multi_reduction <add>, %31, %cst_9 [2] : vector<2x4x4xf32> to vector<2x4xf32>
    %33 = math.sqrt %32 : vector<2x4xf32>
    %cst_10 = arith.constant 9.99999993E-9 : f32
    %34 = vector.broadcast %cst_10 : f32 to vector<2x4xf32>
    %35 = arith.addf %33, %34 : vector<2x4xf32>
    %cst_11 = arith.constant 1.000000e+00 : f32
    %36 = vector.broadcast %cst_11 : f32 to vector<2x4xf32>
    %37 = arith.divf %36, %35 : vector<2x4xf32>
    %38 = vector.shape_cast %37 : vector<2x4xf32> to vector<2x4x1xf32>
    %39 = vector.shape_cast %37 : vector<2x4xf32> to vector<2x1x4xf32>
    %40 = vector.broadcast %38 : vector<2x4x1xf32> to vector<2x4x4xf32>
    %41 = vector.broadcast %39 : vector<2x1x4xf32> to vector<2x4x4xf32>
    %42 = arith.mulf %40, %41 : vector<2x4x4xf32>
    %43 = arith.mulf %23, %42 : vector<2x4x4xf32>
    %44 = arith.subf %22, %43 : vector<2x4x4xf32>
    %45 = arith.mulf %44, %44 : vector<2x4x4xf32>
    %46 = vector.shape_cast %45 : vector<2x4x4xf32> to vector<1x2x4x4xf32>
    %cst_12 = arith.constant dense<0.000000e+00> : vector<1xf32>
    %47 = vector.multi_reduction <add>, %46, %cst_12 [1, 2, 3] : vector<1x2x4x4xf32> to vector<1xf32>
    %48 = vector.shape_cast %47 : vector<1xf32> to vector<1x1x1x1xf32>
    %49 = vector.extract %48[0, 0, 0, 0] : f32 from vector<1x1x1x1xf32>
    %cst_13 = arith.constant 3.125000e-02 : f32
    %50 = arith.mulf %49, %cst_13 : f32
    %c0_14 = arith.constant 0 : index
    %c0_15 = arith.constant 0 : index
    %51 = memref.load %arg3[%c0_14, %c0_15] : memref<1x1xf32, #tpu.memory_space<smem>>
    memref.store %50, %arg3[%c0_14, %c0_15] : memref<1x1xf32, #tpu.memory_space<smem>>
    return
  }
  func.func @transform_0(%arg0: i32) -> (i32, i32, i32) {
    %c0_i32 = arith.constant 0 : i32
    %c0_i32_0 = arith.constant 0 : i32
    %c0_i32_1 = arith.constant 0 : i32
    return %arg0, %c0_i32, %c0_i32_0 : i32, i32, i32
  }
  func.func @transform_1(%arg0: i32) -> (i32, i32, i32) {
    %c0_i32 = arith.constant 0 : i32
    %c0_i32_0 = arith.constant 0 : i32
    %c0_i32_1 = arith.constant 0 : i32
    return %arg0, %c0_i32, %c0_i32_0 : i32, i32, i32
  }
  func.func @transform_2(%arg0: i32) -> (i32, i32) {
    %c0_i32 = arith.constant 0 : i32
    %c0_i32_0 = arith.constant 0 : i32
    return %arg0, %c0_i32 : i32, i32
  }
}

</mosaic_0001>

<llo_original>
// kernel: tpu_custom_call.1
$region0: #{tpu_custom_call.1}
  #allocation0 [shape = 'u32[]', space=smem, size = 0x4, offset = 0x4, fixed_abs, tag = 'smem constant byte address 0x4 - core index']
  #allocation1 [shape = 'u32[144,128]{1,0:T(1,128)}', space=vmem, size = 0x12000, scoped, tag = 'internal scratch']
  %s0 = inlined_call_operand.hbm [shape: f32[2,4,4], index: 0, kind: input, shape index: {}]
  %s1 = inlined_call_operand.hbm [shape: f32[2,4,4], index: 1, kind: input, shape index: {}]
  %s2 = inlined_call_operand.hbm [shape: f32[1,1], index: 2, kind: output, shape index: {}]
  %s3 = sld [smem:[#allocation0]]
  $region26: #{tpu_custom_call.1} parent=0
    _
  %s5 = ssub.s32 1, %s3
  %s6 = scalar_select 0, %s5, %s3
  $region1: #{tpu_custom_call.1} parent=0
    #allocation2 [shape = 'u8[4096]{0}', space=vmem, size = 0x1000, scoped, tag = 'input window, operand 0, single buffered']
    #allocation3 [shape = 's32[1]{0}', space=sflag, size = 0x4, scoped, tag = 'scoped memory for tpu_custom_call.1']
    #allocation4 [shape = 's32[1]{0}', space=sflag, size = 0x4, scoped, tag = 'scoped memory for tpu_custom_call.1']
    #allocation5 [shape = 'u8[4096]{0}', space=vmem, size = 0x1000, scoped, tag = 'input window, operand 1, single buffered']
    #allocation6 [shape = 's32[1]{0}', space=sflag, size = 0x4, scoped, tag = 'scoped memory for tpu_custom_call.1']
    #allocation7 [shape = 'u8[512]{0}', space=smem, size = 0x200, scoped, tag = 'output window, operand 0, single buffered']
    %7 = vsyncpa [#allocation3], 0
    %8 = vsyncpa [#allocation6], 0
    %9 = vsyncpa [#allocation4], 0
    // Predicated region
    $region2: #{tpu_custom_call.1} parent=1 // pred_check
      _
    $region3: #{tpu_custom_call.1} parent=1 // pred_check_branch
      %11 = sbr.rel (0) target = $region5
    $region4: #{tpu_custom_call.1} parent=1 // pred_region
      %s13 = ssub.s32 128, 128
      %14 = vsyncadd [#allocation3], %s13
      %s15 = sshll.u32 [#allocation2], 4
      %s16 = int_to_ptr.vmem [resolvable:$true] %s15
      %21 = dma.hbm_to_vmem [thread:$0]  %s0, 128, %s16, [#allocation3], 64, 64, 4
    $region5: #{tpu_custom_call.1} parent=1 // pred_fallthru
      _
    // Predicated region
    $region6: #{tpu_custom_call.1} parent=1 // pred_check
      _
    $region7: #{tpu_custom_call.1} parent=1 // pred_check_branch
      %23 = sbr.rel (0) target = $region9
    $region8: #{tpu_custom_call.1} parent=1 // pred_region
      %s25 = ssub.s32 128, 128
      %26 = vsyncadd [#allocation6], %s25
      %s27 = sshll.u32 [#allocation5], 4
      %s28 = int_to_ptr.vmem [resolvable:$true] %s27
      %33 = dma.hbm_to_vmem [thread:$0]  %s1, 128, %s28, [#allocation6], 64, 64, 4
    $region9: #{tpu_custom_call.1} parent=1 // pred_fallthru
      _
    // Predicated region
    $region10: #{tpu_custom_call.1} parent=1 // pred_check
      _
    $region11: #{tpu_custom_call.1} parent=1 // pred_check_branch
      %35 = sbr.rel (0) target = $region13
    $region12: #{tpu_custom_call.1} parent=1 // pred_region
      %36 = dma.done [#allocation3], 128
    $region13: #{tpu_custom_call.1} parent=1 // pred_fallthru
      _
    // Predicated region
    $region14: #{tpu_custom_call.1} parent=1 // pred_check
      _
    $region15: #{tpu_custom_call.1} parent=1 // pred_check_branch
      %38 = sbr.rel (0) target = $region17
    $region16: #{tpu_custom_call.1} parent=1 // pred_region
      %39 = dma.done [#allocation6], 128
    $region17: #{tpu_custom_call.1} parent=1 // pred_fallthru
      _
    %v40 = vld [vmem:[#allocation2] sm:$0xf]
    %v41 = vld [vmem:[#allocation2 + $0x4] sm:$0xf]
    %v42 = vld [vmem:[#allocation5] sm:$0xf]
    %v43 = vld [vmem:[#allocation5 + $0x4] sm:$0xf]
    %44 = vxpose.xlu0.b32.start [1/16] %v42, 128
    %45 = vxpose.xlu0.b32.cont [2/16] 0.0, 128
    %46 = vxpose.xlu0.b32.cont [3/16] 0.0, 128
    %47 = vxpose.xlu0.b32.cont [4/16] 0.0, 128
    %48 = vxpose.xlu0.b32.cont [5/16] 0.0, 128
    %49 = vxpose.xlu0.b32.cont [6/16] 0.0, 128
    %50 = vxpose.xlu0.b32.cont [7/16] 0.0, 128
    %51 = vxpose.xlu0.b32.cont [8/16] 0.0, 128
    %52 = vxpose.xlu0.b32.cont [9/16] 0.0, 128
    %53 = vxpose.xlu0.b32.cont [10/16] 0.0, 128
    %54 = vxpose.xlu0.b32.cont [11/16] 0.0, 128
    %55 = vxpose.xlu0.b32.cont [12/16] 0.0, 128
    %56 = vxpose.xlu0.b32.cont [13/16] 0.0, 128
    %57 = vxpose.xlu0.b32.cont [14/16] 0.0, 128
    %58 = vxpose.xlu0.b32.cont [15/16] 0.0, 128
    %59 = vxpose.xlu0.b32.end [16/16] 0.0, 128
    %v60 = vpop.trf.xlu0
    %v61 = vpop.trf.xlu0
    %v62 = vpop.trf.xlu0
    %v63 = vpop.trf.xlu0
    %v64 = vpop.trf.xlu0
    %v65 = vpop.trf.xlu0
    %v66 = vpop.trf.xlu0
    %v67 = vpop.trf.xlu0
    %v68 = vpop.trf.xlu0
    %v69 = vpop.trf.xlu0
    %v70 = vpop.trf.xlu0
    %v71 = vpop.trf.xlu0
    %v72 = vpop.trf.xlu0
    %v73 = vpop.trf.xlu0
    %v74 = vpop.trf.xlu0
    %v75 = vpop.trf.xlu0
    %vm76 = vcmask 31744
    %v78 = vsel %vm76, %v60, 0
    %vm80 = vcmask 1043456
    %v82 = vsel %vm80, %v42, 0
    %84 = vmatprep.subr.mxu0 0.0
    %85 = vmatpush1.msra.mxu0 %v82
    %86 = vmatprep.subr.mxu0 0.0
    %87 = vmatpush1.msra.mxu0 0.0
    %88 = vmatprep.subr.mxu0 0.0
    %89 = vmatpush1.msra.mxu0 0.0
    %90 = vmatprep.subr.mxu0 0.0
    %91 = vmatpush1.msra.mxu0 0.0
    %92 = vmatprep.subr.mxu0 0.0
    %93 = vmatpush1.msra.mxu0 0.0
    %94 = vmatprep.subr.mxu0 0.0
    %95 = vmatpush1.msra.mxu0 0.0
    %96 = vmatprep.subr.mxu0 0.0
    %97 = vmatpush1.msra.mxu0 0.0
    %98 = vmatprep.subr.mxu0 0.0
    %99 = vmatpush1.msra.mxu0 0.0
    %100 = vmatprep.subr.mxu0 0.0
    %101 = vmatpush1.msra.mxu0 0.0
    %102 = vmatprep.subr.mxu0 0.0
    %103 = vmatpush1.msra.mxu0 0.0
    %104 = vmatprep.subr.mxu0 0.0
    %105 = vmatpush1.msra.mxu0 0.0
    %106 = vmatprep.subr.mxu0 0.0
    %107 = vmatpush1.msra.mxu0 0.0
    %108 = vmatprep.subr.mxu0 0.0
    %109 = vmatpush1.msra.mxu0 0.0
    %110 = vmatprep.subr.mxu0 0.0
    %111 = vmatpush1.msra.mxu0 0.0
    %112 = vmatprep.subr.mxu0 0.0
    %113 = vmatpush1.msra.mxu0 0.0
    %114 = vmatprep.subr.mxu0 0.0
    %115 = vmatpush1.msra.mxu0 0.0
    %116 = vmatprep.subr.mxu0 0.0
    %117 = vmatpush1.msra.mxu0 0.0
    %118 = vmatprep.subr.mxu0 0.0
    %119 = vmatpush1.msra.mxu0 0.0
    %120 = vmatprep.subr.mxu0 0.0
    %121 = vmatpush1.msra.mxu0 0.0
    %122 = vmatprep.subr.mxu0 0.0
    %123 = vmatpush1.msra.mxu0 0.0
    %124 = vmatprep.subr.mxu0 0.0
    %125 = vmatpush1.msra.mxu0 0.0
    %126 = vmatprep.subr.mxu0 0.0
    %127 = vmatpush1.msra.mxu0 0.0
    %128 = vmatprep.subr.mxu0 0.0
    %129 = vmatpush1.msra.mxu0 0.0
    %130 = vmatprep.subr.mxu0 0.0
    %131 = vmatpush1.msra.mxu0 0.0
    %132 = vmatprep.subr.mxu0 0.0
    %133 = vmatpush1.msra.mxu0 0.0
    %134 = vmatprep.subr.mxu0 0.0
    %135 = vmatpush1.msra.mxu0 0.0
    %136 = vmatprep.subr.mxu0 0.0
    %137 = vmatpush1.msra.mxu0 0.0
    %138 = vmatprep.subr.mxu0 0.0
    %139 = vmatpush1.msra.mxu0 0.0
    %140 = vmatprep.subr.mxu0 0.0
    %141 = vmatpush1.msra.mxu0 0.0
    %142 = vmatprep.subr.mxu0 0.0
    %143 = vmatpush1.msra.mxu0 0.0
    %144 = vmatprep.subr.mxu0 0.0
    %145 = vmatpush1.msra.mxu0 0.0
    %146 = vmatprep.subr.mxu0 0.0
    %147 = vmatpush1.msra.mxu0 0.0
    %148 = vmatprep.mubr.f32.mxu0 0.0
    %149 = vmatmul.mubr.f32.gmra.mrb[0].mxu0 %v78
    %v150 = vpop.f32.mrb[0].mxu0
    %v151 = vadd.f32 0.0, %v150
    %v152 = vpop.f32.mrb[0].mxu0
    %153 = vdwg.mxu0
    %154 = vxpose.xlu0.b32.start [1/16] %v43, 128
    %155 = vxpose.xlu0.b32.cont [2/16] 0.0, 128
    %156 = vxpose.xlu0.b32.cont [3/16] 0.0, 128
    %157 = vxpose.xlu0.b32.cont [4/16] 0.0, 128
    %158 = vxpose.xlu0.b32.cont [5/16] 0.0, 128
    %159 = vxpose.xlu0.b32.cont [6/16] 0.0, 128
    %160 = vxpose.xlu0.b32.cont [7/16] 0.0, 128
    %161 = vxpose.xlu0.b32.cont [8/16] 0.0, 128
    %162 = vxpose.xlu0.b32.cont [9/16] 0.0, 128
    %163 = vxpose.xlu0.b32.cont [10/16] 0.0, 128
    %164 = vxpose.xlu0.b32.cont [11/16] 0.0, 128
    %165 = vxpose.xlu0.b32.cont [12/16] 0.0, 128
    %166 = vxpose.xlu0.b32.cont [13/16] 0.0, 128
    %167 = vxpose.xlu0.b32.cont [14/16] 0.0, 128
    %168 = vxpose.xlu0.b32.cont [15/16] 0.0, 128
    %169 = vxpose.xlu0.b32.end [16/16] 0.0, 128
    %v170 = vpop.trf.xlu0
    %v171 = vpop.trf.xlu0
    %v172 = vpop.trf.xlu0
    %v173 = vpop.trf.xlu0
    %v174 = vpop.trf.xlu0
    %v175 = vpop.trf.xlu0
    %v176 = vpop.trf.xlu0
    %v177 = vpop.trf.xlu0
    %v178 = vpop.trf.xlu0
    %v179 = vpop.trf.xlu0
    %v180 = vpop.trf.xlu0
    %v181 = vpop.trf.xlu0
    %v182 = vpop.trf.xlu0
    %v183 = vpop.trf.xlu0
    %v184 = vpop.trf.xlu0
    %v185 = vpop.trf.xlu0
    %v187 = vsel %vm76, %v170, 0
    %v190 = vsel %vm80, %v43, 0
    %192 = vmatprep.subr.mxu0 0.0
    %193 = vmatpush1.msra.mxu0 %v190
    %194 = vmatprep.subr.mxu0 0.0
    %195 = vmatpush1.msra.mxu0 0.0
    %196 = vmatprep.subr.mxu0 0.0
    %197 = vmatpush1.msra.mxu0 0.0
    %198 = vmatprep.subr.mxu0 0.0
    %199 = vmatpush1.msra.mxu0 0.0
    %200 = vmatprep.subr.mxu0 0.0
    %201 = vmatpush1.msra.mxu0 0.0
    %202 = vmatprep.subr.mxu0 0.0
    %203 = vmatpush1.msra.mxu0 0.0
    %204 = vmatprep.subr.mxu0 0.0
    %205 = vmatpush1.msra.mxu0 0.0
    %206 = vmatprep.subr.mxu0 0.0
    %207 = vmatpush1.msra.mxu0 0.0
    %208 = vmatprep.subr.mxu0 0.0
    %209 = vmatpush1.msra.mxu0 0.0
    %210 = vmatprep.subr.mxu0 0.0
    %211 = vmatpush1.msra.mxu0 0.0
    %212 = vmatprep.subr.mxu0 0.0
    %213 = vmatpush1.msra.mxu0 0.0
    %214 = vmatprep.subr.mxu0 0.0
    %215 = vmatpush1.msra.mxu0 0.0
    %216 = vmatprep.subr.mxu0 0.0
    %217 = vmatpush1.msra.mxu0 0.0
    %218 = vmatprep.subr.mxu0 0.0
    %219 = vmatpush1.msra.mxu0 0.0
    %220 = vmatprep.subr.mxu0 0.0
    %221 = vmatpush1.msra.mxu0 0.0
    %222 = vmatprep.subr.mxu0 0.0
    %223 = vmatpush1.msra.mxu0 0.0
    %224 = vmatprep.subr.mxu0 0.0
    %225 = vmatpush1.msra.mxu0 0.0
    %226 = vmatprep.subr.mxu0 0.0
    %227 = vmatpush1.msra.mxu0 0.0
    %228 = vmatprep.subr.mxu0 0.0
    %229 = vmatpush1.msra.mxu0 0.0
    %230 = vmatprep.subr.mxu0 0.0
    %231 = vmatpush1.msra.mxu0 0.0
    %232 = vmatprep.subr.mxu0 0.0
    %233 = vmatpush1.msra.mxu0 0.0
    %234 = vmatprep.subr.mxu0 0.0
    %235 = vmatpush1.msra.mxu0 0.0
    %236 = vmatprep.subr.mxu0 0.0
    %237 = vmatpush1.msra.mxu0 0.0
    %238 = vmatprep.subr.mxu0 0.0
    %239 = vmatpush1.msra.mxu0 0.0
    %240 = vmatprep.subr.mxu0 0.0
    %241 = vmatpush1.msra.mxu0 0.0
    %242 = vmatprep.subr.mxu0 0.0
    %243 = vmatpush1.msra.mxu0 0.0
    %244 = vmatprep.subr.mxu0 0.0
    %245 = vmatpush1.msra.mxu0 0.0
    %246 = vmatprep.subr.mxu0 0.0
    %247 = vmatpush1.msra.mxu0 0.0
    %248 = vmatprep.subr.mxu0 0.0
    %249 = vmatpush1.msra.mxu0 0.0
    %250 = vmatprep.subr.mxu0 0.0
    %251 = vmatpush1.msra.mxu0 0.0
    %252 = vmatprep.subr.mxu0 0.0
    %253 = vmatpush1.msra.mxu0 0.0
    %254 = vmatprep.subr.mxu0 0.0
    %255 = vmatpush1.msra.mxu0 0.0
    %256 = vmatprep.mubr.f32.mxu0 0.0
    %257 = vmatmul.mubr.f32.gmra.mrb[0].mxu0 %v187
    %v258 = vpop.f32.mrb[0].mxu0
    %v259 = vadd.f32 0.0, %v258
    %v260 = vpop.f32.mrb[0].mxu0
    %261 = vdwg.mxu0
    %v262 = vlaneseq
    %v263 = vshrl.u32 %v262, 7
    %v264 = vlaneseq
    %v265 = vand.u32 %v264, 127
    %vm266 = vcmp.eq.s32.totalorder %v263, %v265
    %v267 = vsel %vm266, 1, 0
    %v268 = vcvt.s32.f32 %v267
    %v269 = vmul.f32 %v151, %v268
    %v270 = vmul.f32 %v259, %v268
    %vm271 = vcmask 27648
    %v272 = vsel %vm271, %v269, 0.0
    %273 = vadd.xlane.f32.xlu0 %v272
    %v274 = vpop.xlane.xlu0 %273
    %v275 = vsel %vm271, %v270, 0.0
    %276 = vadd.xlane.f32.xlu0 %v275
    %v277 = vpop.xlane.xlu0 %276
    %v278 = vrsqrt.pop %v274
    %v279 = vmul.f32 %v274, %v278
    %vm280 = vcmp.eq.f32.partialorder %v274, inf
    %v281 = vsel %vm280, %v274, %v279
    %vm282 = vcmp.eq.f32.partialorder %v274, 0.0
    %v283 = vand.u32 %v274, 2147483648
    %v284 = vsel %vm282, %v283, %v281
    %v285 = vrsqrt.pop %v277
    %v286 = vmul.f32 %v277, %v285
    %vm287 = vcmp.eq.f32.partialorder %v277, inf
    %v288 = vsel %vm287, %v277, %v286
    %vm289 = vcmp.eq.f32.partialorder %v277, 0.0
    %v290 = vand.u32 %v277, 2147483648
    %v291 = vsel %vm289, %v290, %v288
    %v292 = vadd.f32 %v284, 1e-08
    %v293 = vadd.f32 %v291, 1e-08
    %v294 = vrcp.pop %v292
    %v295 = vmul.f32 1.0, %v294
    %v296 = vrcp.pop %v293
    %v297 = vmul.f32 1.0, %v296
    %v300 = vlaneseq
    %v301 = vshrl.u32 %v300, 7
    %v302 = vsub.s32 %v265, %v301
    %v303 = vrot.slane %v295, %v302
    %v304 = vlaneseq
    %v305 = vshrl.u32 %v304, 7
    %v306 = vsub.s32 %v265, %v305
    %v307 = vrot.slane %v297, %v306
    %vm308 = vcmask 1042434
    %v309 = vsel %vm308, %v303, %v303
    %vm310 = vcmask 1043459
    %v311 = vsel %vm310, %v303, %v309
    %v312 = vsel %vm308, %v307, %v307
    %v313 = vsel %vm310, %v307, %v312
    %v316 = vmul.f32 %v295, %v311
    %v317 = vmul.f32 %v297, %v313
    %v318 = vmul.f32 %v151, %v316
    %v319 = vmul.f32 %v259, %v317
    %320 = vxpose.xlu0.b32.start [1/16] %v40, 128
    %321 = vxpose.xlu0.b32.cont [2/16] 0.0, 128
    %322 = vxpose.xlu0.b32.cont [3/16] 0.0, 128
    %323 = vxpose.xlu0.b32.cont [4/16] 0.0, 128
    %324 = vxpose.xlu0.b32.cont [5/16] 0.0, 128
    %325 = vxpose.xlu0.b32.cont [6/16] 0.0, 128
    %326 = vxpose.xlu0.b32.cont [7/16] 0.0, 128
    %327 = vxpose.xlu0.b32.cont [8/16] 0.0, 128
    %328 = vxpose.xlu0.b32.cont [9/16] 0.0, 128
    %329 = vxpose.xlu0.b32.cont [10/16] 0.0, 128
    %330 = vxpose.xlu0.b32.cont [11/16] 0.0, 128
    %331 = vxpose.xlu0.b32.cont [12/16] 0.0, 128
    %332 = vxpose.xlu0.b32.cont [13/16] 0.0, 128
    %333 = vxpose.xlu0.b32.cont [14/16] 0.0, 128
    %334 = vxpose.xlu0.b32.cont [15/16] 0.0, 128
    %335 = vxpose.xlu0.b32.end [16/16] 0.0, 128
    %v336 = vpop.trf.xlu0
    %v337 = vpop.trf.xlu0
    %v338 = vpop.trf.xlu0
    %v339 = vpop.trf.xlu0
    %v340 = vpop.trf.xlu0
    %v341 = vpop.trf.xlu0
    %v342 = vpop.trf.xlu0
    %v343 = vpop.trf.xlu0
    %v344 = vpop.trf.xlu0
    %v345 = vpop.trf.xlu0
    %v346 = vpop.trf.xlu0
    %v347 = vpop.trf.xlu0
    %v348 = vpop.trf.xlu0
    %v349 = vpop.trf.xlu0
    %v350 = vpop.trf.xlu0
    %v351 = vpop.trf.xlu0
    %v353 = vsel %vm76, %v336, 0
    %v356 = vsel %vm80, %v40, 0
    %358 = vmatprep.subr.mxu0 0.0
    %359 = vmatpush1.msra.mxu0 %v356
    %360 = vmatprep.subr.mxu0 0.0
    %361 = vmatpush1.msra.mxu0 0.0
    %362 = vmatprep.subr.mxu0 0.0
    %363 = vmatpush1.msra.mxu0 0.0
    %364 = vmatprep.subr.mxu0 0.0
    %365 = vmatpush1.msra.mxu0 0.0
    %366 = vmatprep.subr.mxu0 0.0
    %367 = vmatpush1.msra.mxu0 0.0
    %368 = vmatprep.subr.mxu0 0.0
    %369 = vmatpush1.msra.mxu0 0.0
    %370 = vmatprep.subr.mxu0 0.0
    %371 = vmatpush1.msra.mxu0 0.0
    %372 = vmatprep.subr.mxu0 0.0
    %373 = vmatpush1.msra.mxu0 0.0
    %374 = vmatprep.subr.mxu0 0.0
    %375 = vmatpush1.msra.mxu0 0.0
    %376 = vmatprep.subr.mxu0 0.0
    %377 = vmatpush1.msra.mxu0 0.0
    %378 = vmatprep.subr.mxu0 0.0
    %379 = vmatpush1.msra.mxu0 0.0
    %380 = vmatprep.subr.mxu0 0.0
    %381 = vmatpush1.msra.mxu0 0.0
    %382 = vmatprep.subr.mxu0 0.0
    %383 = vmatpush1.msra.mxu0 0.0
    %384 = vmatprep.subr.mxu0 0.0
    %385 = vmatpush1.msra.mxu0 0.0
    %386 = vmatprep.subr.mxu0 0.0
    %387 = vmatpush1.msra.mxu0 0.0
    %388 = vmatprep.subr.mxu0 0.0
    %389 = vmatpush1.msra.mxu0 0.0
    %390 = vmatprep.subr.mxu0 0.0
    %391 = vmatpush1.msra.mxu0 0.0
    %392 = vmatprep.subr.mxu0 0.0
    %393 = vmatpush1.msra.mxu0 0.0
    %394 = vmatprep.subr.mxu0 0.0
    %395 = vmatpush1.msra.mxu0 0.0
    %396 = vmatprep.subr.mxu0 0.0
    %397 = vmatpush1.msra.mxu0 0.0
    %398 = vmatprep.subr.mxu0 0.0
    %399 = vmatpush1.msra.mxu0 0.0
    %400 = vmatprep.subr.mxu0 0.0
    %401 = vmatpush1.msra.mxu0 0.0
    %402 = vmatprep.subr.mxu0 0.0
    %403 = vmatpush1.msra.mxu0 0.0
    %404 = vmatprep.subr.mxu0 0.0
    %405 = vmatpush1.msra.mxu0 0.0
    %406 = vmatprep.subr.mxu0 0.0
    %407 = vmatpush1.msra.mxu0 0.0
    %408 = vmatprep.subr.mxu0 0.0
    %409 = vmatpush1.msra.mxu0 0.0
    %410 = vmatprep.subr.mxu0 0.0
    %411 = vmatpush1.msra.mxu0 0.0
    %412 = vmatprep.subr.mxu0 0.0
    %413 = vmatpush1.msra.mxu0 0.0
    %414 = vmatprep.subr.mxu0 0.0
    %415 = vmatpush1.msra.mxu0 0.0
    %416 = vmatprep.subr.mxu0 0.0
    %417 = vmatpush1.msra.mxu0 0.0
    %418 = vmatprep.subr.mxu0 0.0
    %419 = vmatpush1.msra.mxu0 0.0
    %420 = vmatprep.subr.mxu0 0.0
    %421 = vmatpush1.msra.mxu0 0.0
    %422 = vmatprep.mubr.f32.mxu0 0.0
    %423 = vmatmul.mubr.f32.gmra.mrb[0].mxu0 %v353
    %v424 = vpop.f32.mrb[0].mxu0
    %v425 = vadd.f32 0.0, %v424
    %v426 = vpop.f32.mrb[0].mxu0
    %427 = vdwg.mxu0
    %428 = vxpose.xlu0.b32.start [1/16] %v41, 128
    %429 = vxpose.xlu0.b32.cont [2/16] 0.0, 128
    %430 = vxpose.xlu0.b32.cont [3/16] 0.0, 128
    %431 = vxpose.xlu0.b32.cont [4/16] 0.0, 128
    %432 = vxpose.xlu0.b32.cont [5/16] 0.0, 128
    %433 = vxpose.xlu0.b32.cont [6/16] 0.0, 128
    %434 = vxpose.xlu0.b32.cont [7/16] 0.0, 128
    %435 = vxpose.xlu0.b32.cont [8/16] 0.0, 128
    %436 = vxpose.xlu0.b32.cont [9/16] 0.0, 128
    %437 = vxpose.xlu0.b32.cont [10/16] 0.0, 128
    %438 = vxpose.xlu0.b32.cont [11/16] 0.0, 128
    %439 = vxpose.xlu0.b32.cont [12/16] 0.0, 128
    %440 = vxpose.xlu0.b32.cont [13/16] 0.0, 128
    %441 = vxpose.xlu0.b32.cont [14/16] 0.0, 128
    %442 = vxpose.xlu0.b32.cont [15/16] 0.0, 128
    %443 = vxpose.xlu0.b32.end [16/16] 0.0, 128
    %v444 = vpop.trf.xlu0
    %v445 = vpop.trf.xlu0
    %v446 = vpop.trf.xlu0
    %v447 = vpop.trf.xlu0
    %v448 = vpop.trf.xlu0
    %v449 = vpop.trf.xlu0
    %v450 = vpop.trf.xlu0
    %v451 = vpop.trf.xlu0
    %v452 = vpop.trf.xlu0
    %v453 = vpop.trf.xlu0
    %v454 = vpop.trf.xlu0
    %v455 = vpop.trf.xlu0
    %v456 = vpop.trf.xlu0
    %v457 = vpop.trf.xlu0
    %v458 = vpop.trf.xlu0
    %v459 = vpop.trf.xlu0
    %v461 = vsel %vm76, %v444, 0
    %v464 = vsel %vm80, %v41, 0
    %466 = vmatprep.subr.mxu0 0.0
    %467 = vmatpush1.msra.mxu0 %v464
    %468 = vmatprep.subr.mxu0 0.0
    %469 = vmatpush1.msra.mxu0 0.0
    %470 = vmatprep.subr.mxu0 0.0
    %471 = vmatpush1.msra.mxu0 0.0
    %472 = vmatprep.subr.mxu0 0.0
    %473 = vmatpush1.msra.mxu0 0.0
    %474 = vmatprep.subr.mxu0 0.0
    %475 = vmatpush1.msra.mxu0 0.0
    %476 = vmatprep.subr.mxu0 0.0
    %477 = vmatpush1.msra.mxu0 0.0
    %478 = vmatprep.subr.mxu0 0.0
    %479 = vmatpush1.msra.mxu0 0.0
    %480 = vmatprep.subr.mxu0 0.0
    %481 = vmatpush1.msra.mxu0 0.0
    %482 = vmatprep.subr.mxu0 0.0
    %483 = vmatpush1.msra.mxu0 0.0
    %484 = vmatprep.subr.mxu0 0.0
    %485 = vmatpush1.msra.mxu0 0.0
    %486 = vmatprep.subr.mxu0 0.0
    %487 = vmatpush1.msra.mxu0 0.0
    %488 = vmatprep.subr.mxu0 0.0
    %489 = vmatpush1.msra.mxu0 0.0
    %490 = vmatprep.subr.mxu0 0.0
    %491 = vmatpush1.msra.mxu0 0.0
    %492 = vmatprep.subr.mxu0 0.0
    %493 = vmatpush1.msra.mxu0 0.0
    %494 = vmatprep.subr.mxu0 0.0
    %495 = vmatpush1.msra.mxu0 0.0
    %496 = vmatprep.subr.mxu0 0.0
    %497 = vmatpush1.msra.mxu0 0.0
    %498 = vmatprep.subr.mxu0 0.0
    %499 = vmatpush1.msra.mxu0 0.0
    %500 = vmatprep.subr.mxu0 0.0
    %501 = vmatpush1.msra.mxu0 0.0
    %502 = vmatprep.subr.mxu0 0.0
    %503 = vmatpush1.msra.mxu0 0.0
    %504 = vmatprep.subr.mxu0 0.0
    %505 = vmatpush1.msra.mxu0 0.0
    %506 = vmatprep.subr.mxu0 0.0
    %507 = vmatpush1.msra.mxu0 0.0
    %508 = vmatprep.subr.mxu0 0.0
    %509 = vmatpush1.msra.mxu0 0.0
    %510 = vmatprep.subr.mxu0 0.0
    %511 = vmatpush1.msra.mxu0 0.0
    %512 = vmatprep.subr.mxu0 0.0
    %513 = vmatpush1.msra.mxu0 0.0
    %514 = vmatprep.subr.mxu0 0.0
    %515 = vmatpush1.msra.mxu0 0.0
    %516 = vmatprep.subr.mxu0 0.0
    %517 = vmatpush1.msra.mxu0 0.0
    %518 = vmatprep.subr.mxu0 0.0
    %519 = vmatpush1.msra.mxu0 0.0
    %520 = vmatprep.subr.mxu0 0.0
    %521 = vmatpush1.msra.mxu0 0.0
    %522 = vmatprep.subr.mxu0 0.0
    %523 = vmatpush1.msra.mxu0 0.0
    %524 = vmatprep.subr.mxu0 0.0
    %525 = vmatpush1.msra.mxu0 0.0
    %526 = vmatprep.subr.mxu0 0.0
    %527 = vmatpush1.msra.mxu0 0.0
    %528 = vmatprep.subr.mxu0 0.0
    %529 = vmatpush1.msra.mxu0 0.0
    %530 = vmatprep.mubr.f32.mxu0 0.0
    %531 = vmatmul.mubr.f32.gmra.mrb[0].mxu0 %v461
    %v532 = vpop.f32.mrb[0].mxu0
    %v533 = vadd.f32 0.0, %v532
    %v534 = vpop.f32.mrb[0].mxu0
    %535 = vdwg.mxu0
    %v536 = vmul.f32 %v425, %v268
    %v537 = vmul.f32 %v533, %v268
    %v538 = vsel %vm271, %v536, 0.0
    %539 = vadd.xlane.f32.xlu0 %v538
    %v540 = vpop.xlane.xlu0 %539
    %v541 = vsel %vm271, %v537, 0.0
    %542 = vadd.xlane.f32.xlu0 %v541
    %v543 = vpop.xlane.xlu0 %542
    %v544 = vrsqrt.pop %v540
    %v545 = vmul.f32 %v540, %v544
    %vm546 = vcmp.eq.f32.partialorder %v540, inf
    %v547 = vsel %vm546, %v540, %v545
    %vm548 = vcmp.eq.f32.partialorder %v540, 0.0
    %v549 = vand.u32 %v540, 2147483648
    %v550 = vsel %vm548, %v549, %v547
    %v551 = vrsqrt.pop %v543
    %v552 = vmul.f32 %v543, %v551
    %vm553 = vcmp.eq.f32.partialorder %v543, inf
    %v554 = vsel %vm553, %v543, %v552
    %vm555 = vcmp.eq.f32.partialorder %v543, 0.0
    %v556 = vand.u32 %v543, 2147483648
    %v557 = vsel %vm555, %v556, %v554
    %v558 = vadd.f32 %v550, 1e-08
    %v559 = vadd.f32 %v557, 1e-08
    %v560 = vrcp.pop %v558
    %v561 = vmul.f32 1.0, %v560
    %v562 = vrcp.pop %v559
    %v563 = vmul.f32 1.0, %v562
    %v566 = vlaneseq
    %v567 = vshrl.u32 %v566, 7
    %v568 = vsub.s32 %v265, %v567
    %v569 = vrot.slane %v561, %v568
    %v570 = vlaneseq
    %v571 = vshrl.u32 %v570, 7
    %v572 = vsub.s32 %v265, %v571
    %v573 = vrot.slane %v563, %v572
    %v574 = vsel %vm308, %v569, %v569
    %v575 = vsel %vm310, %v569, %v574
    %v576 = vsel %vm308, %v573, %v573
    %v577 = vsel %vm310, %v573, %v576
    %v580 = vmul.f32 %v561, %v575
    %v581 = vmul.f32 %v563, %v577
    %v582 = vmul.f32 %v425, %v580
    %v583 = vmul.f32 %v533, %v581
    %v584 = vsub.f32 %v318, %v582
    %v585 = vsub.f32 %v319, %v583
    %v586 = vmul.f32 %v584, %v584
    %v587 = vmul.f32 %v585, %v585
    %v588 = vsel %vm271, %v586, 0.0
    %v589 = vsel %vm271, %v587, 0.0
    %v590 = vadd.f32 %v588, %v589
    %591 = vadd.xlane.f32.xlu0 %v590
    %v592 = vpop.xlane.xlu0 %591
    %v593 = vrot.slane %v592, 4
    %v594 = vadd.f32 %v592, %v593
    %v595 = vrot.slane %v594, 2
    %v596 = vadd.f32 %v594, %v595
    %v597 = vrot.slane %v596, 1
    %v598 = vadd.f32 %v596, %v597
    %s599 = vtos %v598
    %s600 = smul.f32 %s599, 0.03125
    %s601 = scalar_lea.smem [#allocation7], 0
    %602 = sst [smem:[%s601]] %s600
    // Predicated region
    $region18: #{tpu_custom_call.1} parent=1 // pred_check
      _
    $region19: #{tpu_custom_call.1} parent=1 // pred_check_branch
      %604 = sbr.rel (0) target = $region21
    $region20: #{tpu_custom_call.1} parent=1 // pred_region
      %s606 = ssub.s32 16, 16
      %607 = vsyncadd [#allocation4], %s606
      %610 = dma.smem_to_hbm [#allocation7], 16, %s2, [#allocation4]
    $region21: #{tpu_custom_call.1} parent=1 // pred_fallthru
      _
    // Predicated region
    $region22: #{tpu_custom_call.1} parent=1 // pred_check
      _
    $region23: #{tpu_custom_call.1} parent=1 // pred_check_branch
      %612 = sbr.rel (0) target = $region25
    $region24: #{tpu_custom_call.1} parent=1 // pred_region
      %613 = dma.done [#allocation4], 16
    $region25: #{tpu_custom_call.1} parent=1 // pred_fallthru
      _
    %614 = sfence
    %615 = vsyncpa [#allocation3], 1
    %616 = vsyncpa [#allocation6], 1
    %617 = vsyncpa [#allocation4], 1

</llo_original>
